<compile_context>
chip_gen: v5e
topology: v5e:2x2
jax: 0.10.0
libtpu: 0.0.40
codegen_flags: <defaults>
</compile_context>

<pallas_src>
import numpy as np
import jax
import jax.numpy as jnp
from jax.experimental import pallas as pl
from jax.experimental.pallas import tpu as pltpu


def decoder_attn_kernel(x_ref, h0_ref, c0_ref, enc_ref,
                        w_cat_ref, b_ref,
                        w_score_t_ref,
                        w_comb_ref, b_comb_ref,
                        w_out_ref, b_out_ref,
                        pred_ref, h_out_ref, c_out_ref,
                        xin_ref, cat_ref):
    f32 = jnp.float32
    x = x_ref[...]                        # (B, H)   embedded tokens (whole batch)
    enc = enc_ref[...]                    # (L, B, HD)  PyTorch layout, no transpose
    num_layers = h0_ref.shape[0]
    H = x_ref.shape[1]
    HD = enc_ref.shape[2]
    mxu_dtype = w_cat_ref.dtype           # f32 by default; bf16 on v6e/v7x at scale

    # ---- multi-layer LSTM, single time step; both gate matmuls fused into one (2H,4H) dot ----
    layer_in = x
    for l in range(num_layers):
        h_prev = h0_ref[l]                # (B, H)
        c_prev = c0_ref[l]                # (B, H)
        xin_ref[:, :H] = layer_in         # pack [x | h_prev] -> single K=2H matmul
        xin_ref[:, H:] = h_prev
        z = jnp.dot(xin_ref[...].astype(mxu_dtype), w_cat_ref[l],
                    preferred_element_type=f32) + b_ref[l]     # (B, 4H), gates [i|f|o|g]
        sig = jax.nn.sigmoid(z[:, :3 * H])                     # one sigmoid for i, f, o
        i_g = sig[:, 0 * H:1 * H]
        f_g = sig[:, 1 * H:2 * H]
        o_g = sig[:, 2 * H:3 * H]
        g_g = jnp.tanh(z[:, 3 * H:])                           # one tanh for g
        c_new = f_g * c_prev + i_g * g_g
        h_new = o_g * jnp.tanh(c_new)
        h_out_ref[l] = h_new              # per-layer write, no concat (aliased in-place)
        c_out_ref[l] = c_new
        layer_in = h_new

    out = layer_in                        # (B, HD) top-layer LSTM output (HD == H, unidirectional)

    # ---- attention over source length L (enc stays (L, B, HD)) ----
    # scores[l,b] = enc[l,b]·(Ws^T out[b]); the b_score·out term is constant over l and
    # cancels exactly in the softmax, so it is dropped entirely.
    q = jnp.dot(out.astype(mxu_dtype), w_score_t_ref[...],
                preferred_element_type=f32)                    # (B, HD)
    scores = jnp.sum(enc * q[None], axis=-1, keepdims=True)    # (L, B, 1)
    m = jnp.max(scores, axis=0, keepdims=True)                 # (1, B, 1)
    e = jnp.exp(scores - m)
    denom = jnp.sum(e, axis=0, keepdims=True)
    attn = e * pl.reciprocal(denom, approx=False)   # approx=True would exceed 1e-4 test rtol
    con = jnp.sum(enc * attn, axis=0)                          # (B, HD)

    # ---- context combiner (single K=2HD matmul via packed scratch) + head + log-softmax ----
    cat_ref[:, :HD] = con
    cat_ref[:, HD:] = out
    h_tilde = jnp.tanh(jnp.dot(cat_ref[...].astype(mxu_dtype), w_comb_ref[...],
                               preferred_element_type=f32) + b_comb_ref[...])   # (B, H)
    logits = jnp.dot(h_tilde.astype(mxu_dtype), w_out_ref[...],
                     preferred_element_type=f32) + b_out_ref[...]               # (B, Vp) lane-dense
    mx = jnp.max(logits, axis=1, keepdims=True)
    lse = mx + jnp.log(jnp.sum(jnp.exp(logits - mx), axis=1, keepdims=True))
    pred_ref[...] = logits - lse


def pack_params(params, mxu_dtype=jnp.float32):
    """One-time host-side repack of weights into kernel-friendly layouts.

    mxu_dtype=jnp.bfloat16 is recommended on v6e/v7x at realistic sizes (halves weight
    DMA/VMEM and doubles MXU throughput); default f32 keeps the 1e-4 test tolerance.
    """
    w_ih = params["w_ih"]                 # (layers, 4, H_out, H_in), gate order [i, f, g, o]
    w_hh = params["w_hh"]
    layers, _, H, _ = w_ih.shape
    V = params["w_out"].shape[1]
    Vp = ((V + 127) // 128) * 128         # lane-dense vocab

    perm = np.array([0, 1, 3, 2])         # [i,f,g,o] -> [i,f,o,g]: one sigmoid + one tanh in-kernel

    def fuse(w):                          # -> (layers, H_in, 4H) so the kernel computes x @ W
        return jnp.transpose(w[:, perm], (0, 3, 1, 2)).reshape(layers, H, 4 * H)

    # stacked [w_ih; w_hh] -> one (2H, 4H) weight per layer (single gate matmul in-kernel)
    w_cat = jnp.concatenate([fuse(w_ih), fuse(w_hh)], axis=1)          # (layers, 2H, 4H)
    # pre-summed gate bias, reordered, (layers, 1, 4H)
    b_cat = jnp.transpose((params["b_ih"] + params["b_hh"])[:, perm],
                          (0, 2, 1, 3)).reshape(layers, 1, 4 * H)

    return {
        "embedding": params["embedding"],
        "w_cat": w_cat.astype(mxu_dtype),
        "b": b_cat,
        "w_score_t": params["w_score"].T.astype(mxu_dtype),   # q = out @ Ws^T, no in-kernel transpose
        # b_score intentionally NOT packed: it cancels in the attention softmax.
        "w_comb": params["w_comb"].astype(mxu_dtype),          # (2HD, H), used with packed [con|out]
        "b_comb": params["b_comb"],
        "w_out": jnp.pad(params["w_out"], ((0, 0), (0, Vp - V))).astype(mxu_dtype),
        "b_out": jnp.pad(params["b_out"], ((0, 0), (0, Vp - V)),
                         constant_values=-1e30),               # padded logits -> exp == 0 exactly
        "vocab_size": V,
    }


def decoder_attn_forward(packed, input_data, h_hidden, c_hidden, encoder_hiddens):
    """input_data: (1, B) int32; h/c_hidden: (layers, B, H); encoder_hiddens: (L, B, HD).
    Returns pred (B, V) log-probs and (h, c) in PyTorch (layers, B, H) layout."""
    # glue: embedding gather (dropout is identity at inference)
    emb = packed["embedding"][input_data[0]]          # (B, H)
    B, H = emb.shape
    layers = h_hidden.shape[0]
    HD = encoder_hiddens.shape[2]
    Vp = packed["w_out"].shape[1]
    V = packed["vocab_size"]

    inputs = (emb, h_hidden, c_hidden, encoder_hiddens,
              packed["w_cat"], packed["b"],
              packed["w_score_t"],
              packed["w_comb"], packed["b_comb"],
              packed["w_out"], packed["b_out"])
    out_shapes = (
        jax.ShapeDtypeStruct((B, Vp), jnp.float32),
        jax.ShapeDtypeStruct((layers, B, H), jnp.float32),
        jax.ShapeDtypeStruct((layers, B, H), jnp.float32),
    )

    # explicit scoped-VMEM limit sized from the actual resident buffers (64 MiB cap for v7x)
    nbytes = sum(int(np.prod(a.shape)) * a.dtype.itemsize for a in inputs)
    nbytes += sum(int(np.prod(s.shape)) * np.dtype(s.dtype).itemsize for s in out_shapes)
    vmem_limit = int(min(64 << 20, max(16 << 20, 2 * nbytes + (2 << 20))))

    vmem = pl.BlockSpec(memory_space=pltpu.MemorySpace.VMEM)
    pred_p, h_out, c_out = pl.pallas_call(
        decoder_attn_kernel,
        out_shape=out_shapes,
        in_specs=[vmem] * len(inputs),
        out_specs=(vmem, vmem, vmem),
        scratch_shapes=[pltpu.VMEM((B, 2 * H), jnp.float32),    # [x | h_prev] pack
                        pltpu.VMEM((B, 2 * HD), jnp.float32)],  # [con | out] pack
        input_output_aliases={1: 1, 2: 2},   # h/c updated in place (no extra HBM allocations)
        compiler_params=pltpu.CompilerParams(vmem_limit_bytes=vmem_limit),
    )(*inputs)

    pred = pred_p[:, :V] if Vp != V else pred_p       # drop lane padding
    return pred, (h_out, c_out)                       # already in (layers, B, H) layout


def init_params(key, hidden_size, output_size, layers, directions=1):
    H, V = hidden_size, output_size
    HD = H * directions
    keys = jax.random.split(key, 11)

    def u(k, shape, scale):
        return jax.random.uniform(k, shape, jnp.float32, -scale, scale)

    s = 1.0 / np.sqrt(H)
    return {
        "embedding": jax.random.normal(keys[0], (V, H), jnp.float32) * 0.1,
        "w_ih": u(keys[1], (layers, 4, H, H), s),
        "w_hh": u(keys[2], (layers, 4, H, H), s),
        "b_ih": u(keys[3], (layers, 4, 1, H), s),
        "b_hh": u(keys[4], (layers, 4, 1, H), s),
        "w_score": u(keys[5], (HD, HD), 1.0 / np.sqrt(HD)),
        "b_score": u(keys[6], (1, HD), 1.0 / np.sqrt(HD)),
        "w_comb": u(keys[7], (2 * HD, H), 1.0 / np.sqrt(2 * HD)),
        "b_comb": u(keys[8], (1, H), 1.0 / np.sqrt(2 * HD)),
        "w_out": u(keys[9], (H, V), s),
        "b_out": u(keys[10], (1, V), s),
    }


def reference_forward(params, input_data, h_hidden, c_hidden, encoder_hiddens):
    """Pure-JAX reference mirroring the PyTorch forward (eval mode)."""
    emb = params["embedding"][input_data[0]]              # (B, H)
    layers = h_hidden.shape[0]
    x = emb
    h_list, c_list = [], []
    for l in range(layers):
        h_prev, c_prev = h_hidden[l], c_hidden[l]

        def gate(g, act, x=x, h_prev=h_prev, l=l):
            z = (x @ params["w_ih"][l, g].T + h_prev @ params["w_hh"][l, g].T
                 + params["b_ih"][l, g] + params["b_hh"][l, g])
            return act(z)

        i_g, f_g = gate(0, jax.nn.sigmoid), gate(1, jax.nn.sigmoid)
        g_g, o_g = gate(2, jnp.tanh), gate(3, jax.nn.sigmoid)
        c_new = f_g * c_prev + i_g * g_g
        h_new = o_g * jnp.tanh(c_new)
        h_list.append(h_new)
        c_list.append(c_new)
        x = h_new
    out = x                                               # (B, HD)
    enc = jnp.transpose(encoder_hiddens, (1, 0, 2))       # (B, L, HD)
    prep = enc @ params["w_score"] + params["b_score"]    # reference keeps b_score (cancels)
    scores = jnp.einsum("blh,bh->bl", prep, out)
    attn = jax.nn.softmax(scores, axis=1)
    con = jnp.einsum("blh,bl->bh", enc, attn)
    cat = jnp.concatenate([con, out], axis=1)
    h_tilde = jnp.tanh(cat @ params["w_comb"] + params["b_comb"])
    logits = h_tilde @ params["w_out"] + params["b_out"]
    pred = jax.nn.log_softmax(logits, axis=1)
    return pred, (jnp.stack(h_list), jnp.stack(c_list))


if __name__ == "__main__":
    H, V, LAYERS, B, L = 32, 64, 2, 2, 8
    DIRECTIONS = 1  # bidirectional=False

    key = jax.random.PRNGKey(0)
    pkey, ik, hk, ck, ek = jax.random.split(key, 5)
    params = init_params(pkey, H, V, LAYERS, DIRECTIONS)
    packed = pack_params(params)   # pack_params(params, mxu_dtype=jnp.bfloat16) on v6e/v7x at scale

    input_data = jax.random.randint(ik, (1, B), 0, V)                                   # (seq=1, B)
    h_hidden = jax.random.normal(hk, (LAYERS * DIRECTIONS, B, H), jnp.float32) * 0.1    # (layers, B, H)
    c_hidden = jax.random.normal(ck, (LAYERS * DIRECTIONS, B, H), jnp.float32) * 0.1    # (layers, B, H)
    encoder_hiddens = jax.random.normal(ek, (L, B, H * DIRECTIONS), jnp.float32) * 0.1  # (L, B, HD)

    # reference first (h/c inputs may be donated to the aliased kernel outputs)
    ref_pred, (ref_h, ref_c) = reference_forward(
        params, input_data, h_hidden, c_hidden, encoder_hiddens)
    jax.block_until_ready((ref_pred, ref_h, ref_c))

    pred, (hiddens, c_hiddens) = decoder_attn_forward(
        packed, input_data, h_hidden, c_hidden, encoder_hiddens)
    jax.block_until_ready((pred, hiddens, c_hiddens))

    np.testing.assert_allclose(np.asarray(pred), np.asarray(ref_pred), rtol=1e-4, atol=1e-4)
    np.testing.assert_allclose(np.asarray(hiddens), np.asarray(ref_h), rtol=1e-4, atol=1e-4)
    np.testing.assert_allclose(np.asarray(c_hiddens), np.asarray(ref_c), rtol=1e-4, atol=1e-4)

    print("KERNEL_OK")
</pallas_src>

<mosaic_0001>
module attributes {stable_mosaic.version = 11 : i64} {
  func.func @decoder_attn_kernel(%arg0: memref<2x32xf32, #tpu.memory_space<vmem>>, %arg1: memref<2x2x32xf32, #tpu.memory_space<vmem>>, %arg2: memref<2x2x32xf32, #tpu.memory_space<vmem>>, %arg3: memref<8x2x32xf32, #tpu.memory_space<vmem>>, %arg4: memref<2x64x128xf32, #tpu.memory_space<vmem>>, %arg5: memref<2x1x128xf32, #tpu.memory_space<vmem>>, %arg6: memref<32x32xf32, #tpu.memory_space<vmem>>, %arg7: memref<64x32xf32, #tpu.memory_space<vmem>>, %arg8: memref<1x32xf32, #tpu.memory_space<vmem>>, %arg9: memref<32x128xf32, #tpu.memory_space<vmem>>, %arg10: memref<1x128xf32, #tpu.memory_space<vmem>>, %arg11: memref<2x128xf32, #tpu.memory_space<vmem>>, %arg12: memref<2x2x32xf32, #tpu.memory_space<vmem>>, %arg13: memref<2x2x32xf32, #tpu.memory_space<vmem>>, %arg14: memref<2x64xf32, #tpu.memory_space<vmem>>, %arg15: memref<2x64xf32, #tpu.memory_space<vmem>>) attributes {dimension_semantics = [], scalar_prefetch = 0 : i64, scratch_operands = 2 : i64, tpu.core_type = #tpu.core_type<tc>} {
    %c0 = arith.constant 0 : index
    %c0_0 = arith.constant 0 : index
    %0 = vector.load %arg0[%c0, %c0_0] : memref<2x32xf32, #tpu.memory_space<vmem>>, vector<2x32xf32>
    %c0_1 = arith.constant 0 : index
    %c0_2 = arith.constant 0 : index
    %c0_3 = arith.constant 0 : index
    %1 = vector.load %arg3[%c0_1, %c0_2, %c0_3] : memref<8x2x32xf32, #tpu.memory_space<vmem>>, vector<8x2x32xf32>
    %c0_4 = arith.constant 0 : index
    %c0_5 = arith.constant 0 : index
    %c0_6 = arith.constant 0 : index
    %2 = vector.load %arg1[%c0_4, %c0_5, %c0_6] : memref<2x2x32xf32, #tpu.memory_space<vmem>>, vector<1x2x32xf32>
    %3 = vector.shape_cast %2 : vector<1x2x32xf32> to vector<2x32xf32>
    %c0_7 = arith.constant 0 : index
    %c0_8 = arith.constant 0 : index
    %c0_9 = arith.constant 0 : index
    %4 = vector.load %arg2[%c0_7, %c0_8, %c0_9] : memref<2x2x32xf32, #tpu.memory_space<vmem>>, vector<1x2x32xf32>
    %5 = vector.shape_cast %4 : vector<1x2x32xf32> to vector<2x32xf32>
    %c0_10 = arith.constant 0 : index
    %c0_11 = arith.constant 0 : index
    %6 = vector.load %arg14[%c0_10, %c0_11] : memref<2x64xf32, #tpu.memory_space<vmem>>, vector<2x32xf32>
    tpu.vector_store %arg14[%c0_10, %c0_11], %0 {strides = array<i32>} : memref<2x64xf32, #tpu.memory_space<vmem>>, vector<2x32xf32>,
    %c0_12 = arith.constant 0 : index
    %c32 = arith.constant 32 : index
    %7 = vector.load %arg14[%c0_12, %c32] : memref<2x64xf32, #tpu.memory_space<vmem>>, vector<2x32xf32>
    tpu.vector_store %arg14[%c0_12, %c32], %3 {strides = array<i32>} : memref<2x64xf32, #tpu.memory_space<vmem>>, vector<2x32xf32>,
    %c0_13 = arith.constant 0 : index
    %c0_14 = arith.constant 0 : index
    %8 = vector.load %arg14[%c0_13, %c0_14] : memref<2x64xf32, #tpu.memory_space<vmem>>, vector<2x64xf32>
    %c0_15 = arith.constant 0 : index
    %c0_16 = arith.constant 0 : index
    %c0_17 = arith.constant 0 : index
    %9 = vector.load %arg4[%c0_15, %c0_16, %c0_17] : memref<2x64x128xf32, #tpu.memory_space<vmem>>, vector<1x64x128xf32>
    %10 = vector.shape_cast %9 : vector<1x64x128xf32> to vector<64x128xf32>
    %cst = arith.constant dense<0.000000e+00> : vector<2x128xf32>
    %11 = tpu.matmul %8, %10, %cst {dimension_numbers = #tpu.dot_dimension_numbers<[1], [0], [0], [1], [0, 0, 1, 1], [], []>} : vector<2x64xf32>, vector<64x128xf32>, vector<2x128xf32> -> vector<2x128xf32>
    %c0_18 = arith.constant 0 : index
    %c0_19 = arith.constant 0 : index
    %c0_20 = arith.constant 0 : index
    %12 = vector.load %arg5[%c0_18, %c0_19, %c0_20] : memref<2x1x128xf32, #tpu.memory_space<vmem>>, vector<1x1x128xf32>
    %13 = vector.shape_cast %12 : vector<1x1x128xf32> to vector<1x128xf32>
    %14 = vector.broadcast %13 : vector<1x128xf32> to vector<2x128xf32>
    %15 = arith.addf %11, %14 : vector<2x128xf32>
    %16 = vector.extract_strided_slice %15 {offsets = [0, 0], sizes = [2, 96], strides = [1, 1]} : vector<2x128xf32> to vector<2x96xf32>
    %17 = arith.negf %16 : vector<2x96xf32>
    %18 = math.exp %17 : vector<2x96xf32>
    %cst_21 = arith.constant 1.000000e+00 : f32
    %19 = vector.broadcast %cst_21 : f32 to vector<2x96xf32>
    %20 = arith.addf %19, %18 : vector<2x96xf32>
    %21 = arith.divf %19, %20 : vector<2x96xf32>
    %22 = vector.extract_strided_slice %21 {offsets = [0, 0], sizes = [2, 32], strides = [1, 1]} : vector<2x96xf32> to vector<2x32xf32>
    %23 = vector.extract_strided_slice %21 {offsets = [0, 32], sizes = [2, 32], strides = [1, 1]} : vector<2x96xf32> to vector<2x32xf32>
    %24 = vector.extract_strided_slice %21 {offsets = [0, 64], sizes = [2, 32], strides = [1, 1]} : vector<2x96xf32> to vector<2x32xf32>
    %25 = vector.extract_strided_slice %15 {offsets = [0, 96], sizes = [2, 32], strides = [1, 1]} : vector<2x128xf32> to vector<2x32xf32>
    %26 = math.tanh %25 : vector<2x32xf32>
    %27 = arith.mulf %23, %5 : vector<2x32xf32>
    %28 = arith.mulf %22, %26 : vector<2x32xf32>
    %29 = arith.addf %27, %28 : vector<2x32xf32>
    %30 = math.tanh %29 : vector<2x32xf32>
    %31 = arith.mulf %24, %30 : vector<2x32xf32>
    %c0_22 = arith.constant 0 : index
    %c0_23 = arith.constant 0 : index
    %c0_24 = arith.constant 0 : index
    %32 = vector.load %arg12[%c0_22, %c0_23, %c0_24] : memref<2x2x32xf32, #tpu.memory_space<vmem>>, vector<1x2x32xf32>
    %33 = vector.shape_cast %32 : vector<1x2x32xf32> to vector<2x32xf32>
    %34 = vector.shape_cast %31 : vector<2x32xf32> to vector<1x2x32xf32>
    tpu.vector_store %arg12[%c0_22, %c0_23, %c0_24], %34 {strides = array<i32>} : memref<2x2x32xf32, #tpu.memory_space<vmem>>, vector<1x2x32xf32>,
    %c0_25 = arith.constant 0 : index
    %c0_26 = arith.constant 0 : index
    %c0_27 = arith.constant 0 : index
    %35 = vector.load %arg13[%c0_25, %c0_26, %c0_27] : memref<2x2x32xf32, #tpu.memory_space<vmem>>, vector<1x2x32xf32>
    %36 = vector.shape_cast %35 : vector<1x2x32xf32> to vector<2x32xf32>
    %37 = vector.shape_cast %29 : vector<2x32xf32> to vector<1x2x32xf32>
    tpu.vector_store %arg13[%c0_25, %c0_26, %c0_27], %37 {strides = array<i32>} : memref<2x2x32xf32, #tpu.memory_space<vmem>>, vector<1x2x32xf32>,
    %c1 = arith.constant 1 : index
    %c0_28 = arith.constant 0 : index
    %c0_29 = arith.constant 0 : index
    %38 = vector.load %arg1[%c1, %c0_28, %c0_29] : memref<2x2x32xf32, #tpu.memory_space<vmem>>, vector<1x2x32xf32>
    %39 = vector.shape_cast %38 : vector<1x2x32xf32> to vector<2x32xf32>
    %c1_30 = arith.constant 1 : index
    %c0_31 = arith.constant 0 : index
    %c0_32 = arith.constant 0 : index
    %40 = vector.load %arg2[%c1_30, %c0_31, %c0_32] : memref<2x2x32xf32, #tpu.memory_space<vmem>>, vector<1x2x32xf32>
    %41 = vector.shape_cast %40 : vector<1x2x32xf32> to vector<2x32xf32>
    %c0_33 = arith.constant 0 : index
    %c0_34 = arith.constant 0 : index
    %42 = vector.load %arg14[%c0_33, %c0_34] : memref<2x64xf32, #tpu.memory_space<vmem>>, vector<2x32xf32>
    tpu.vector_store %arg14[%c0_33, %c0_34], %31 {strides = array<i32>} : memref<2x64xf32, #tpu.memory_space<vmem>>, vector<2x32xf32>,
    %c0_35 = arith.constant 0 : index
    %c32_36 = arith.constant 32 : index
    %43 = vector.load %arg14[%c0_35, %c32_36] : memref<2x64xf32, #tpu.memory_space<vmem>>, vector<2x32xf32>
    tpu.vector_store %arg14[%c0_35, %c32_36], %39 {strides = array<i32>} : memref<2x64xf32, #tpu.memory_space<vmem>>, vector<2x32xf32>,
    %c0_37 = arith.constant 0 : index
    %c0_38 = arith.constant 0 : index
    %44 = vector.load %arg14[%c0_37, %c0_38] : memref<2x64xf32, #tpu.memory_space<vmem>>, vector<2x64xf32>
    %c1_39 = arith.constant 1 : index
    %c0_40 = arith.constant 0 : index
    %c0_41 = arith.constant 0 : index
    %45 = vector.load %arg4[%c1_39, %c0_40, %c0_41] : memref<2x64x128xf32, #tpu.memory_space<vmem>>, vector<1x64x128xf32>
    %46 = vector.shape_cast %45 : vector<1x64x128xf32> to vector<64x128xf32>
    %cst_42 = arith.constant dense<0.000000e+00> : vector<2x128xf32>
    %47 = tpu.matmul %44, %46, %cst_42 {dimension_numbers = #tpu.dot_dimension_numbers<[1], [0], [0], [1], [0, 0, 1, 1], [], []>} : vector<2x64xf32>, vector<64x128xf32>, vector<2x128xf32> -> vector<2x128xf32>
    %c1_43 = arith.constant 1 : index
    %c0_44 = arith.constant 0 : index
    %c0_45 = arith.constant 0 : index
    %48 = vector.load %arg5[%c1_43, %c0_44, %c0_45] : memref<2x1x128xf32, #tpu.memory_space<vmem>>, vector<1x1x128xf32>
    %49 = vector.shape_cast %48 : vector<1x1x128xf32> to vector<1x128xf32>
    %50 = vector.broadcast %49 : vector<1x128xf32> to vector<2x128xf32>
    %51 = arith.addf %47, %50 : vector<2x128xf32>
    %52 = vector.extract_strided_slice %51 {offsets = [0, 0], sizes = [2, 96], strides = [1, 1]} : vector<2x128xf32> to vector<2x96xf32>
    %53 = arith.negf %52 : vector<2x96xf32>
    %54 = math.exp %53 : vector<2x96xf32>
    %cst_46 = arith.constant 1.000000e+00 : f32
    %55 = vector.broadcast %cst_46 : f32 to vector<2x96xf32>
    %56 = arith.addf %55, %54 : vector<2x96xf32>
    %57 = arith.divf %55, %56 : vector<2x96xf32>
    %58 = vector.extract_strided_slice %57 {offsets = [0, 0], sizes = [2, 32], strides = [1, 1]} : vector<2x96xf32> to vector<2x32xf32>
    %59 = vector.extract_strided_slice %57 {offsets = [0, 32], sizes = [2, 32], strides = [1, 1]} : vector<2x96xf32> to vector<2x32xf32>
    %60 = vector.extract_strided_slice %57 {offsets = [0, 64], sizes = [2, 32], strides = [1, 1]} : vector<2x96xf32> to vector<2x32xf32>
    %61 = vector.extract_strided_slice %51 {offsets = [0, 96], sizes = [2, 32], strides = [1, 1]} : vector<2x128xf32> to vector<2x32xf32>
    %62 = math.tanh %61 : vector<2x32xf32>
    %63 = arith.mulf %59, %41 : vector<2x32xf32>
    %64 = arith.mulf %58, %62 : vector<2x32xf32>
    %65 = arith.addf %63, %64 : vector<2x32xf32>
    %66 = math.tanh %65 : vector<2x32xf32>
    %67 = arith.mulf %60, %66 : vector<2x32xf32>
    %c1_47 = arith.constant 1 : index
    %c0_48 = arith.constant 0 : index
    %c0_49 = arith.constant 0 : index
    %68 = vector.load %arg12[%c1_47, %c0_48, %c0_49] : memref<2x2x32xf32, #tpu.memory_space<vmem>>, vector<1x2x32xf32>
    %69 = vector.shape_cast %68 : vector<1x2x32xf32> to vector<2x32xf32>
    %70 = vector.shape_cast %67 : vector<2x32xf32> to vector<1x2x32xf32>
    tpu.vector_store %arg12[%c1_47, %c0_48, %c0_49], %70 {strides = array<i32>} : memref<2x2x32xf32, #tpu.memory_space<vmem>>, vector<1x2x32xf32>,
    %c1_50 = arith.constant 1 : index
    %c0_51 = arith.constant 0 : index
    %c0_52 = arith.constant 0 : index
    %71 = vector.load %arg13[%c1_50, %c0_51, %c0_52] : memref<2x2x32xf32, #tpu.memory_space<vmem>>, vector<1x2x32xf32>
    %72 = vector.shape_cast %71 : vector<1x2x32xf32> to vector<2x32xf32>
    %73 = vector.shape_cast %65 : vector<2x32xf32> to vector<1x2x32xf32>
    tpu.vector_store %arg13[%c1_50, %c0_51, %c0_52], %73 {strides = array<i32>} : memref<2x2x32xf32, #tpu.memory_space<vmem>>, vector<1x2x32xf32>,
    %c0_53 = arith.constant 0 : index
    %c0_54 = arith.constant 0 : index
    %74 = vector.load %arg6[%c0_53, %c0_54] : memref<32x32xf32, #tpu.memory_space<vmem>>, vector<32x32xf32>
    %cst_55 = arith.constant dense<0.000000e+00> : vector<2x32xf32>
    %75 = tpu.matmul %67, %74, %cst_55 {dimension_numbers = #tpu.dot_dimension_numbers<[1], [0], [0], [1], [0, 0, 1, 1], [], []>} : vector<2x32xf32>, vector<32x32xf32>, vector<2x32xf32> -> vector<2x32xf32>
    %76 = vector.shape_cast %75 : vector<2x32xf32> to vector<1x2x32xf32>
    %77 = vector.broadcast %76 : vector<1x2x32xf32> to vector<8x2x32xf32>
    %78 = arith.mulf %1, %77 : vector<8x2x32xf32>
    %cst_56 = arith.constant dense<0.000000e+00> : vector<8x2xf32>
    %79 = vector.multi_reduction <add>, %78, %cst_56 [2] : vector<8x2x32xf32> to vector<8x2xf32>
    %80 = vector.shape_cast %79 : vector<8x2xf32> to vector<8x2x1xf32>
    %cst_57 = arith.constant dense<0xFF800000> : vector<2x1xf32>
    %81 = vector.multi_reduction <maximumf>, %80, %cst_57 [0] : vector<8x2x1xf32> to vector<2x1xf32>
    %82 = vector.shape_cast %81 : vector<2x1xf32> to vector<1x2x1xf32>
    %83 = vector.broadcast %82 : vector<1x2x1xf32> to vector<8x2x1xf32>
    %84 = arith.subf %80, %83 : vector<8x2x1xf32>
    %85 = math.exp %84 : vector<8x2x1xf32>
    %cst_58 = arith.constant dense<0.000000e+00> : vector<2x1xf32>
    %86 = vector.multi_reduction <add>, %85, %cst_58 [0] : vector<8x2x1xf32> to vector<2x1xf32>
    %87 = vector.shape_cast %86 : vector<2x1xf32> to vector<1x2x1xf32>
    %88 = tpu.reciprocal %87 : vector<1x2x1xf32> -> vector<1x2x1xf32>
    %89 = vector.broadcast %88 : vector<1x2x1xf32> to vector<8x2x1xf32>
    %90 = arith.mulf %85, %89 : vector<8x2x1xf32>
    %91 = vector.broadcast %90 : vector<8x2x1xf32> to vector<8x2x32xf32>
    %92 = arith.mulf %1, %91 : vector<8x2x32xf32>
    %cst_59 = arith.constant dense<0.000000e+00> : vector<2x32xf32>
    %93 = vector.multi_reduction <add>, %92, %cst_59 [0] : vector<8x2x32xf32> to vector<2x32xf32>
    %c0_60 = arith.constant 0 : index
    %c0_61 = arith.constant 0 : index
    %94 = vector.load %arg15[%c0_60, %c0_61] : memref<2x64xf32, #tpu.memory_space<vmem>>, vector<2x32xf32>
    tpu.vector_store %arg15[%c0_60, %c0_61], %93 {strides = array<i32>} : memref<2x64xf32, #tpu.memory_space<vmem>>, vector<2x32xf32>,
    %c0_62 = arith.constant 0 : index
    %c32_63 = arith.constant 32 : index
    %95 = vector.load %arg15[%c0_62, %c32_63] : memref<2x64xf32, #tpu.memory_space<vmem>>, vector<2x32xf32>
    tpu.vector_store %arg15[%c0_62, %c32_63], %67 {strides = array<i32>} : memref<2x64xf32, #tpu.memory_space<vmem>>, vector<2x32xf32>,
    %c0_64 = arith.constant 0 : index
    %c0_65 = arith.constant 0 : index
    %96 = vector.load %arg15[%c0_64, %c0_65] : memref<2x64xf32, #tpu.memory_space<vmem>>, vector<2x64xf32>
    %c0_66 = arith.constant 0 : index
    %c0_67 = arith.constant 0 : index
    %97 = vector.load %arg7[%c0_66, %c0_67] : memref<64x32xf32, #tpu.memory_space<vmem>>, vector<64x32xf32>
    %cst_68 = arith.constant dense<0.000000e+00> : vector<2x32xf32>
    %98 = tpu.matmul %96, %97, %cst_68 {dimension_numbers = #tpu.dot_dimension_numbers<[1], [0], [0], [1], [0, 0, 1, 1], [], []>} : vector<2x64xf32>, vector<64x32xf32>, vector<2x32xf32> -> vector<2x32xf32>
    %c0_69 = arith.constant 0 : index
    %c0_70 = arith.constant 0 : index
    %99 = vector.load %arg8[%c0_69, %c0_70] : memref<1x32xf32, #tpu.memory_space<vmem>>, vector<1x32xf32>
    %100 = vector.broadcast %99 : vector<1x32xf32> to vector<2x32xf32>
    %101 = arith.addf %98, %100 : vector<2x32xf32>
    %102 = math.tanh %101 : vector<2x32xf32>
    %c0_71 = arith.constant 0 : index
    %c0_72 = arith.constant 0 : index
    %103 = vector.load %arg9[%c0_71, %c0_72] : memref<32x128xf32, #tpu.memory_space<vmem>>, vector<32x128xf32>
    %cst_73 = arith.constant dense<0.000000e+00> : vector<2x128xf32>
    %104 = tpu.matmul %102, %103, %cst_73 {dimension_numbers = #tpu.dot_dimension_numbers<[1], [0], [0], [1], [0, 0, 1, 1], [], []>} : vector<2x32xf32>, vector<32x128xf32>, vector<2x128xf32> -> vector<2x128xf32>
    %c0_74 = arith.constant 0 : index
    %c0_75 = arith.constant 0 : index
    %105 = vector.load %arg10[%c0_74, %c0_75] : memref<1x128xf32, #tpu.memory_space<vmem>>, vector<1x128xf32>
    %106 = vector.broadcast %105 : vector<1x128xf32> to vector<2x128xf32>
    %107 = arith.addf %104, %106 : vector<2x128xf32>
    %cst_76 = arith.constant dense<0xFF800000> : vector<2xf32>
    %108 = vector.multi_reduction <maximumf>, %107, %cst_76 [1] : vector<2x128xf32> to vector<2xf32>
    %109 = vector.shape_cast %108 : vector<2xf32> to vector<2x1xf32>
    %110 = vector.broadcast %109 : vector<2x1xf32> to vector<2x128xf32>
    %111 = arith.subf %107, %110 : vector<2x128xf32>
    %112 = math.exp %111 : vector<2x128xf32>
    %cst_77 = arith.constant dense<0.000000e+00> : vector<2xf32>
    %113 = vector.multi_reduction <add>, %112, %cst_77 [1] : vector<2x128xf32> to vector<2xf32>
    %114 = vector.shape_cast %113 : vector<2xf32> to vector<2x1xf32>
    %115 = math.log %114 : vector<2x1xf32>
    %116 = arith.addf %109, %115 : vector<2x1xf32>
    %117 = vector.broadcast %116 : vector<2x1xf32> to vector<2x128xf32>
    %118 = arith.subf %107, %117 : vector<2x128xf32>
    %c0_78 = arith.constant 0 : index
    %c0_79 = arith.constant 0 : index
    %119 = vector.load %arg11[%c0_78, %c0_79] : memref<2x128xf32, #tpu.memory_space<vmem>>, vector<2x128xf32>
    tpu.vector_store %arg11[%c0_78, %c0_79], %118 {strides = array<i32>} : memref<2x128xf32, #tpu.memory_space<vmem>>, vector<2x128xf32>,
    return
  }
}

</mosaic_0001>

<llo_original>
// kernel: tpu_custom_call.1
$region0: #{tpu_custom_call.1}
  #allocation0 [shape = 'u32[]', space=smem, size = 0x4, offset = 0x4, fixed_abs, tag = 'smem constant byte address 0x4 - core index']
  #allocation1 [shape = 'u32[72,128]{1,0:T(1,128)}', space=vmem, size = 0x9000, scoped, tag = 'internal scratch']
  #allocation2 [shape = 'f32[2,64]{1,0:T(2,128)}', space=vmem, size = 0x400, scoped, tag = 'scratch operand']
  #allocation3 [shape = 'f32[2,64]{1,0:T(2,128)}', space=vmem, size = 0x400, scoped, tag = 'scratch operand']
  %s0 = inlined_call_operand.vmem [shape: f32[2,32], index: 0, kind: input, shape index: {}]
  %s1 = inlined_call_operand.hbm [shape: f32[2,2,32], index: 1, kind: input, shape index: {}, may-alias: {1,12}]
  %s2 = inlined_call_operand.hbm [shape: f32[2,2,32], index: 2, kind: input, shape index: {}, may-alias: {2,13}]
  %s3 = inlined_call_operand.vmem [shape: f32[8,2,32], index: 3, kind: input, shape index: {}]
  %s4 = inlined_call_operand.hbm [shape: f32[2,64,128], index: 4, kind: input, shape index: {}]
  %s5 = inlined_call_operand.vmem [shape: f32[2,1,128], index: 5, kind: input, shape index: {}]
  %s6 = inlined_call_operand.vmem [shape: f32[32,32], index: 6, kind: input, shape index: {}]
  %s7 = inlined_call_operand.vmem [shape: f32[64,32], index: 7, kind: input, shape index: {}]
  %s8 = inlined_call_operand.vmem [shape: f32[1,32], index: 8, kind: input, shape index: {}]
  %s9 = inlined_call_operand.vmem [shape: f32[32,128], index: 9, kind: input, shape index: {}]
  %s10 = inlined_call_operand.vmem [shape: f32[1,128], index: 10, kind: input, shape index: {}]
  %s11 = inlined_call_operand.hbm [shape: f32[2,128], index: 11, kind: output, shape index: {0}]
  %s12 = inlined_call_operand.hbm [shape: f32[2,2,32], index: 12, kind: output, shape index: {1}, may-alias: {1,12}]
  %s13 = inlined_call_operand.hbm [shape: f32[2,2,32], index: 13, kind: output, shape index: {2}, may-alias: {2,13}]
  %14 = xla_tuple %s11, %s12, %s13
  %s15 = sld [smem:[#allocation0]]
  $region82: #{tpu_custom_call.1} parent=0
    _
  %s17 = ssub.s32 1, %s15
  %s18 = scalar_select 0, %s17, %s15
  $region1: #{tpu_custom_call.1} parent=0
    #allocation4 [shape = 'u8[2048]{0}', space=vmem, size = 0x800, scoped, tag = 'input window, operand 1, single buffered']
    #allocation5 [shape = 's32[1]{0}', space=sflag, size = 0x4, scoped, tag = 'scoped memory for tpu_custom_call.1']
    #allocation6 [shape = 's32[1]{0}', space=sflag, size = 0x4, scoped, tag = 'scoped memory for tpu_custom_call.1']
    #allocation7 [shape = 'u8[2048]{0}', space=vmem, size = 0x800, scoped, tag = 'input window, operand 2, single buffered']
    #allocation8 [shape = 's32[1]{0}', space=sflag, size = 0x4, scoped, tag = 'scoped memory for tpu_custom_call.1']
    #allocation9 [shape = 'u8[65536]{0}', space=vmem, size = 0x10000, scoped, tag = 'input window, operand 4, single buffered']
    #allocation10 [shape = 'u8[1024]{0}', space=vmem, size = 0x400, scoped, tag = 'output window, operand 0, single buffered']
    #allocation11 [shape = 'u8[2048]{0}', space=vmem, size = 0x800, scoped, tag = 'output window, operand 1, single buffered']
    #allocation12 [shape = 's32[1]{0}', space=sflag, size = 0x4, scoped, tag = 'scoped memory for tpu_custom_call.1']
    #allocation13 [shape = 'u8[2048]{0}', space=vmem, size = 0x800, scoped, tag = 'output window, operand 2, single buffered']
    %19 = vsyncpa [#allocation5], 0
    %20 = vsyncpa [#allocation8], 0
    %21 = vsyncpa [#allocation6], 0
    %22 = vsyncpa [#allocation12], 0
    // Predicated region
    $region2: #{tpu_custom_call.1} parent=1 // pred_check
      _
    $region3: #{tpu_custom_call.1} parent=1 // pred_check_branch
      %24 = sbr.rel (0) target = $region5
    $region4: #{tpu_custom_call.1} parent=1 // pred_region
      _
    $region5: #{tpu_custom_call.1} parent=1 // pred_fallthru
      _
    // Predicated region
    $region6: #{tpu_custom_call.1} parent=1 // pred_check
      _
    $region7: #{tpu_custom_call.1} parent=1 // pred_check_branch
      %26 = sbr.rel (0) target = $region9
    $region8: #{tpu_custom_call.1} parent=1 // pred_region
      %28 = vsyncadd [#allocation5], 0
      %s29 = sshll.u32 %s1, 4
      %s30 = int_to_ptr.hbm [resolvable:$true] %s29
      %s31 = sshll.u32 [#allocation4], 4
      %s32 = int_to_ptr.vmem [resolvable:$true] %s31
      %37 = dma.hbm_to_vmem [thread:$0]  %s30, 64, %s32, [#allocation5], 32, 32, 2
    $region9: #{tpu_custom_call.1} parent=1 // pred_fallthru
      _
    // Predicated region
    $region10: #{tpu_custom_call.1} parent=1 // pred_check
      _
    $region11: #{tpu_custom_call.1} parent=1 // pred_check_branch
      %39 = sbr.rel (0) target = $region13
    $region12: #{tpu_custom_call.1} parent=1 // pred_region
      %41 = vsyncadd [#allocation8], 0
      %s42 = sshll.u32 %s2, 4
      %s43 = int_to_ptr.hbm [resolvable:$true] %s42
      %s44 = sshll.u32 [#allocation7], 4
      %s45 = int_to_ptr.vmem [resolvable:$true] %s44
      %50 = dma.hbm_to_vmem [thread:$0]  %s43, 64, %s45, [#allocation8], 32, 32, 2
    $region13: #{tpu_custom_call.1} parent=1 // pred_fallthru
      _
    // Predicated region
    $region14: #{tpu_custom_call.1} parent=1 // pred_check
      _
    $region15: #{tpu_custom_call.1} parent=1 // pred_check_branch
      %52 = sbr.rel (0) target = $region17
    $region16: #{tpu_custom_call.1} parent=1 // pred_region
      _
    $region17: #{tpu_custom_call.1} parent=1 // pred_fallthru
      _
    // Predicated region
    $region18: #{tpu_custom_call.1} parent=1 // pred_check
      _
    $region19: #{tpu_custom_call.1} parent=1 // pred_check_branch
      %54 = sbr.rel (0) target = $region21
    $region20: #{tpu_custom_call.1} parent=1 // pred_region
      %56 = vsyncadd [#allocation8], 0
      %s57 = sshll.u32 %s4, 4
      %s58 = int_to_ptr.hbm [resolvable:$true] %s57
      %s59 = sshll.u32 [#allocation9], 4
      %s60 = int_to_ptr.vmem [resolvable:$true] %s59
      %65 = dma.hbm_to_vmem [thread:$0]  %s58, 2048, %s60, [#allocation8], 128, 128, 8
    $region21: #{tpu_custom_call.1} parent=1 // pred_fallthru
      _
    // Predicated region
    $region22: #{tpu_custom_call.1} parent=1 // pred_check
      _
    $region23: #{tpu_custom_call.1} parent=1 // pred_check_branch
      %67 = sbr.rel (0) target = $region25
    $region24: #{tpu_custom_call.1} parent=1 // pred_region
      _
    $region25: #{tpu_custom_call.1} parent=1 // pred_fallthru
      _
    // Predicated region
    $region26: #{tpu_custom_call.1} parent=1 // pred_check
      _
    $region27: #{tpu_custom_call.1} parent=1 // pred_check_branch
      %69 = sbr.rel (0) target = $region29
    $region28: #{tpu_custom_call.1} parent=1 // pred_region
      _
    $region29: #{tpu_custom_call.1} parent=1 // pred_fallthru
      _
    // Predicated region
    $region30: #{tpu_custom_call.1} parent=1 // pred_check
      _
    $region31: #{tpu_custom_call.1} parent=1 // pred_check_branch
      %71 = sbr.rel (0) target = $region33
    $region32: #{tpu_custom_call.1} parent=1 // pred_region
      _
    $region33: #{tpu_custom_call.1} parent=1 // pred_fallthru
      _
    // Predicated region
    $region34: #{tpu_custom_call.1} parent=1 // pred_check
      _
    $region35: #{tpu_custom_call.1} parent=1 // pred_check_branch
      %73 = sbr.rel (0) target = $region37
    $region36: #{tpu_custom_call.1} parent=1 // pred_region
      _
    $region37: #{tpu_custom_call.1} parent=1 // pred_fallthru
      _
    // Predicated region
    $region38: #{tpu_custom_call.1} parent=1 // pred_check
      _
    $region39: #{tpu_custom_call.1} parent=1 // pred_check_branch
      %75 = sbr.rel (0) target = $region41
    $region40: #{tpu_custom_call.1} parent=1 // pred_region
      _
    $region41: #{tpu_custom_call.1} parent=1 // pred_fallthru
      _
    // Predicated region
    $region42: #{tpu_custom_call.1} parent=1 // pred_check
      _
    $region43: #{tpu_custom_call.1} parent=1 // pred_check_branch
      %77 = sbr.rel (0) target = $region45
    $region44: #{tpu_custom_call.1} parent=1 // pred_region
      _
    $region45: #{tpu_custom_call.1} parent=1 // pred_fallthru
      _
    // Predicated region
    $region46: #{tpu_custom_call.1} parent=1 // pred_check
      _
    $region47: #{tpu_custom_call.1} parent=1 // pred_check_branch
      %79 = sbr.rel (0) target = $region49
    $region48: #{tpu_custom_call.1} parent=1 // pred_region
      %81 = dma.done [#allocation5], 64
    $region49: #{tpu_custom_call.1} parent=1 // pred_fallthru
      _
    // Predicated region
    $region50: #{tpu_custom_call.1} parent=1 // pred_check
      _
    $region51: #{tpu_custom_call.1} parent=1 // pred_check_branch
      %83 = sbr.rel (0) target = $region53
    $region52: #{tpu_custom_call.1} parent=1 // pred_region
      %85 = dma.done [#allocation8], 64
    $region53: #{tpu_custom_call.1} parent=1 // pred_fallthru
      _
    // Predicated region
    $region54: #{tpu_custom_call.1} parent=1 // pred_check
      _
    $region55: #{tpu_custom_call.1} parent=1 // pred_check_branch
      %87 = sbr.rel (0) target = $region57
    $region56: #{tpu_custom_call.1} parent=1 // pred_region
      %89 = dma.done [#allocation8], 2048
    $region57: #{tpu_custom_call.1} parent=1 // pred_fallthru
      _
    %v90 = vld [vmem:[%s0] sm:$0x3]
    %v91 = vld [vmem:[%s3] sm:$0x3]
    %v92 = vld [vmem:[%s3 + $0x2] sm:$0x3]
    %v93 = vld [vmem:[%s3 + $0x4] sm:$0x3]
    %v94 = vld [vmem:[%s3 + $0x6] sm:$0x3]
    %v95 = vld [vmem:[%s3 + $0x8] sm:$0x3]
    %v96 = vld [vmem:[%s3 + $0xa] sm:$0x3]
    %v97 = vld [vmem:[%s3 + $0xc] sm:$0x3]
    %v98 = vld [vmem:[%s3 + $0xe] sm:$0x3]
    %v99 = vld [vmem:[#allocation4] sm:$0x3]
    %v100 = vld [vmem:[#allocation7] sm:$0x3]
    %vm101 = vcmask 254976
    %102 = vst.msk [vmem:[#allocation2] sm:$0x3] %vm101, %v90
    %104 = vrot.lane.b32.xlu0 %v99, 32
    %v105 = vpop.permute.xlu0 %104
    %vm107 = vcmask 517376
    %108 = vst.msk [vmem:[#allocation2] sm:$0x3] %vm107, %v105
    %v109 = vld [vmem:[#allocation2] sm:$0x3]
    %v110 = vld [vmem:[#allocation9] sm:$0xff]
    %v111 = vld [vmem:[#allocation9 + $0x8] sm:$0xff]
    %v112 = vld [vmem:[#allocation9 + $0x10] sm:$0xff]
    %v113 = vld [vmem:[#allocation9 + $0x18] sm:$0xff]
    %v114 = vld [vmem:[#allocation9 + $0x20] sm:$0xff]
    %v115 = vld [vmem:[#allocation9 + $0x28] sm:$0xff]
    %v116 = vld [vmem:[#allocation9 + $0x30] sm:$0xff]
    %v117 = vld [vmem:[#allocation9 + $0x38] sm:$0xff]
    %v118 = vld [vmem:[%s5] sm:$0x1]
    %v120 = vperm.slane %v118, 0
    %vm122 = vcmask 523264
    %v124 = vsel %vm122, %v109, 0
    %126 = vmatpush.msra.mxu0 0.0
    %127 = vmatpush.msra.mxu0 0.0
    %128 = vmatpush.msra.mxu0 0.0
    %129 = vmatpush.msra.mxu0 0.0
    %130 = vmatpush.msra.mxu0 0.0
    %131 = vmatpush.msra.mxu0 0.0
    %132 = vmatpush.msra.mxu0 0.0
    %133 = vmatpush.msra.mxu0 0.0
    %134 = vmatpush.msra.mxu0 %v117
    %135 = vmatpush.msra.mxu0 %v116
    %136 = vmatpush.msra.mxu0 %v115
    %137 = vmatpush.msra.mxu0 %v114
    %138 = vmatpush.msra.mxu0 %v113
    %139 = vmatpush.msra.mxu0 %v112
    %140 = vmatpush.msra.mxu0 %v111
    %141 = vmatpush.msra.mxu0 %v110
    %142 = vmatmul.f32.gmra.mxu0 %v124
    %v143 = vpop.f32.mrf.mxu0
    %v144 = vadd.f32 %v120, %v143
    %145 = vdwg.mxu0
    %v146 = vxor.u32 %v144, 2147483648
    %v147 = vmul.f32 %v146, 1.442695
    %v148 = vpow.pop %v147
    %v149 = vadd.f32 %v148, 1.0
    %v150 = vrcp.pop %v149
    %v151 = vmul.f32 %v149, %v150
    %v152 = vsub.f32 1.0, %v151
    %v153 = vmul.f32 %v150, %v152
    %v154 = vadd.f32 %v150, %v153
    %vm155 = vweird.f32 %v149
    %vm156 = vweird.f32 %v150
    %vm157 = vmor %vm155, %vm156
    %v158 = vsel %vm157, %v150, %v154
    %v159 = vand.u32 2147483647, %v149
    %vm160 = vcmp.eq.f32.partialorder %v159, 8.507059e+37
    %v161 = vand.u32 %v149, 2147483648
    %v162 = vor.u32 1.1754944e-38, %v161
    %v163 = vsel %vm160, %v162, %v158
    %v164 = vmul.f32 1.0, %v163
    %v165 = vtanh.pop %v144
    %167 = vrot.lane.b32.xlu0 %v100, 32
    %v168 = vpop.permute.xlu0 %167
    %v170 = vmul.f32 %v164, %v168
    %172 = vrot.lane.b32.xlu0 %v165, 32
    %v173 = vpop.permute.xlu0 %172
    %v175 = vmul.f32 %v164, %v173
    %177 = vrot.lane.b32.xlu0 %v175, 32
    %v178 = vpop.permute.xlu0 %177
    %v180 = vadd.f32 %v170, %v178
    %v181 = vtanh.pop %v180
    %183 = vrot.lane.b32.xlu0 %v181, 32
    %v184 = vpop.permute.xlu0 %183
    %v186 = vmul.f32 %v164, %v184
    %188 = vrot.lane.b32.xlu0 %v186, 64
    %v189 = vpop.permute.xlu0 %188
    %191 = vst.msk [vmem:[#allocation11] sm:$0x3] %vm101, %v189
    %193 = vrot.lane.b32.xlu0 %v180, 96
    %v194 = vpop.permute.xlu0 %193
    %196 = vst.msk [vmem:[#allocation13] sm:$0x3] %vm101, %v194
    %s197 = scalar_lea.vmem [#allocation4], 2
    %v198 = vld [vmem:[%s197] sm:$0x3]
    %s199 = scalar_lea.vmem [#allocation7], 2
    %v200 = vld [vmem:[%s199] sm:$0x3]
    %201 = vst.msk [vmem:[#allocation2] sm:$0x3] %vm101, %v189
    %203 = vrot.lane.b32.xlu0 %v198, 32
    %v204 = vpop.permute.xlu0 %203
    %206 = vst.msk [vmem:[#allocation2] sm:$0x3] %vm107, %v204
    %v207 = vld [vmem:[#allocation2] sm:$0x3]
    %s208 = scalar_lea.vmem [#allocation9], 64
    %v209 = vld [vmem:[%s208] sm:$0xff]
    %v210 = vld [vmem:[%s208 + $0x8] sm:$0xff]
    %v211 = vld [vmem:[%s208 + $0x10] sm:$0xff]
    %v212 = vld [vmem:[%s208 + $0x18] sm:$0xff]
    %v213 = vld [vmem:[%s208 + $0x20] sm:$0xff]
    %v214 = vld [vmem:[%s208 + $0x28] sm:$0xff]
    %v215 = vld [vmem:[%s208 + $0x30] sm:$0xff]
    %v216 = vld [vmem:[%s208 + $0x38] sm:$0xff]
    %s217 = scalar_lea.vmem %s5, 1
    %v218 = vld [vmem:[%s217] sm:$0x1]
    %v220 = vperm.slane %v218, 0
    %v223 = vsel %vm122, %v207, 0
    %225 = vmatpush.msra.mxu0 0.0
    %226 = vmatpush.msra.mxu0 0.0
    %227 = vmatpush.msra.mxu0 0.0
    %228 = vmatpush.msra.mxu0 0.0
    %229 = vmatpush.msra.mxu0 0.0
    %230 = vmatpush.msra.mxu0 0.0
    %231 = vmatpush.msra.mxu0 0.0
    %232 = vmatpush.msra.mxu0 0.0
    %233 = vmatpush.msra.mxu0 %v216
    %234 = vmatpush.msra.mxu0 %v215
    %235 = vmatpush.msra.mxu0 %v214
    %236 = vmatpush.msra.mxu0 %v213
    %237 = vmatpush.msra.mxu0 %v212
    %238 = vmatpush.msra.mxu0 %v211
    %239 = vmatpush.msra.mxu0 %v210
    %240 = vmatpush.msra.mxu0 %v209
    %241 = vmatmul.f32.gmra.mxu0 %v223
    %v242 = vpop.f32.mrf.mxu0
    %v243 = vadd.f32 %v220, %v242
    %244 = vdwg.mxu0
    %v245 = vxor.u32 %v243, 2147483648
    %v246 = vmul.f32 %v245, 1.442695
    %v247 = vpow.pop %v246
    %v248 = vadd.f32 %v247, 1.0
    %v249 = vrcp.pop %v248
    %v250 = vmul.f32 %v248, %v249
    %v251 = vsub.f32 1.0, %v250
    %v252 = vmul.f32 %v249, %v251
    %v253 = vadd.f32 %v249, %v252
    %vm254 = vweird.f32 %v248
    %vm255 = vweird.f32 %v249
    %vm256 = vmor %vm254, %vm255
    %v257 = vsel %vm256, %v249, %v253
    %v258 = vand.u32 2147483647, %v248
    %vm259 = vcmp.eq.f32.partialorder %v258, 8.507059e+37
    %v260 = vand.u32 %v248, 2147483648
    %v261 = vor.u32 1.1754944e-38, %v260
    %v262 = vsel %vm259, %v261, %v257
    %v263 = vmul.f32 1.0, %v262
    %v264 = vtanh.pop %v243
    %266 = vrot.lane.b32.xlu0 %v200, 32
    %v267 = vpop.permute.xlu0 %266
    %v269 = vmul.f32 %v263, %v267
    %271 = vrot.lane.b32.xlu0 %v264, 32
    %v272 = vpop.permute.xlu0 %271
    %v274 = vmul.f32 %v263, %v272
    %276 = vrot.lane.b32.xlu0 %v274, 32
    %v277 = vpop.permute.xlu0 %276
    %v279 = vadd.f32 %v269, %v277
    %v280 = vtanh.pop %v279
    %282 = vrot.lane.b32.xlu0 %v280, 32
    %v283 = vpop.permute.xlu0 %282
    %v285 = vmul.f32 %v263, %v283
    %287 = vrot.lane.b32.xlu0 %v285, 64
    %v288 = vpop.permute.xlu0 %287
    %s290 = scalar_lea.vmem [#allocation11], 2
    %291 = vst.msk [vmem:[%s290] sm:$0x3] %vm101, %v288
    %293 = vrot.lane.b32.xlu0 %v279, 96
    %v294 = vpop.permute.xlu0 %293
    %s296 = scalar_lea.vmem [#allocation13], 2
    %297 = vst.msk [vmem:[%s296] sm:$0x3] %vm101, %v294
    %v298 = vld [vmem:[%s6] sm:$0xff]
    %v299 = vld [vmem:[%s6 + $0x8] sm:$0xff]
    %v300 = vld [vmem:[%s6 + $0x10] sm:$0xff]
    %v301 = vld [vmem:[%s6 + $0x18] sm:$0xff]
    %vm302 = vcmask 261120
    %v303 = vsel %vm302, %v288, 0
    %305 = vmatpush.msra.mxu0 0.0
    %306 = vmatpush.msra.mxu0 0.0
    %307 = vmatpush.msra.mxu0 0.0
    %308 = vmatpush.msra.mxu0 0.0
    %309 = vmatpush.msra.mxu0 0.0
    %310 = vmatpush.msra.mxu0 0.0
    %311 = vmatpush.msra.mxu0 0.0
    %312 = vmatpush.msra.mxu0 0.0
    %313 = vmatpush.msra.mxu0 0.0
    %314 = vmatpush.msra.mxu0 0.0
    %315 = vmatpush.msra.mxu0 0.0
    %316 = vmatpush.msra.mxu0 0.0
    %317 = vmatpush.msra.mxu0 %v301
    %318 = vmatpush.msra.mxu0 %v300
    %319 = vmatpush.msra.mxu0 %v299
    %320 = vmatpush.msra.mxu0 %v298
    %321 = vmatmul.f32.gmra.mxu0 %v303
    %v322 = vpop.f32.mrf.mxu0
    %v323 = vadd.f32 0.0, %v322
    %324 = vdwg.mxu0
    %v325 = vmul.f32 %v91, %v323
    %v326 = vmul.f32 %v92, %v323
    %v327 = vmul.f32 %v93, %v323
    %v328 = vmul.f32 %v94, %v323
    %v329 = vmul.f32 %v95, %v323
    %v330 = vmul.f32 %v96, %v323
    %v331 = vmul.f32 %v97, %v323
    %v332 = vmul.f32 %v98, %v323
    %v333 = vsel %vm101, %v325, 0.0
    %334 = vadd.xlane.f32.xlu0 %v333
    %v335 = vpop.xlane.xlu0 %334
    %v336 = vsel %vm101, %v326, 0.0
    %337 = vadd.xlane.f32.xlu0 %v336
    %v338 = vpop.xlane.xlu0 %337
    %v339 = vsel %vm101, %v327, 0.0
    %340 = vadd.xlane.f32.xlu0 %v339
    %v341 = vpop.xlane.xlu0 %340
    %v342 = vsel %vm101, %v328, 0.0
    %343 = vadd.xlane.f32.xlu0 %v342
    %v344 = vpop.xlane.xlu0 %343
    %v345 = vsel %vm101, %v329, 0.0
    %346 = vadd.xlane.f32.xlu0 %v345
    %v347 = vpop.xlane.xlu0 %346
    %v348 = vsel %vm101, %v330, 0.0
    %349 = vadd.xlane.f32.xlu0 %v348
    %v350 = vpop.xlane.xlu0 %349
    %v351 = vsel %vm101, %v331, 0.0
    %352 = vadd.xlane.f32.xlu0 %v351
    %v353 = vpop.xlane.xlu0 %352
    %v354 = vsel %vm101, %v332, 0.0
    %355 = vadd.xlane.f32.xlu0 %v354
    %v356 = vpop.xlane.xlu0 %355
    %vm357 = vcmask 1041408
    %v358 = vsel %vm357, %v335, -inf
    %v359 = vsel %vm357, %v338, -inf
    %v360 = vsel %vm357, %v341, -inf
    %v361 = vsel %vm357, %v344, -inf
    %v362 = vsel %vm357, %v347, -inf
    %v363 = vmax.f32 %v358, %v362
    %v364 = vsel %vm357, %v350, -inf
    %v365 = vmax.f32 %v359, %v364
    %v366 = vsel %vm357, %v353, -inf
    %v367 = vmax.f32 %v360, %v366
    %v368 = vsel %vm357, %v356, -inf
    %v369 = vmax.f32 %v361, %v368
    %v370 = vmax.f32 %v363, %v365
    %v371 = vmax.f32 %v367, %v369
    %v372 = vmax.f32 %v370, %v371
    %v373 = vsub.f32 %v335, %v372
    %v374 = vsub.f32 %v338, %v372
    %v375 = vsub.f32 %v341, %v372
    %v376 = vsub.f32 %v344, %v372
    %v377 = vsub.f32 %v347, %v372
    %v378 = vsub.f32 %v350, %v372
    %v379 = vsub.f32 %v353, %v372
    %v380 = vsub.f32 %v356, %v372
    %v381 = vmul.f32 %v373, 1.442695
    %v382 = vpow.pop %v381
    %v383 = vmul.f32 %v374, 1.442695
    %v384 = vpow.pop %v383
    %v385 = vmul.f32 %v375, 1.442695
    %v386 = vpow.pop %v385
    %v387 = vmul.f32 %v376, 1.442695
    %v388 = vpow.pop %v387
    %v389 = vmul.f32 %v377, 1.442695
    %v390 = vpow.pop %v389
    %v391 = vmul.f32 %v378, 1.442695
    %v392 = vpow.pop %v391
    %v393 = vmul.f32 %v379, 1.442695
    %v394 = vpow.pop %v393
    %v395 = vmul.f32 %v380, 1.442695
    %v396 = vpow.pop %v395
    %v397 = vsel %vm357, %v382, 0.0
    %v398 = vsel %vm357, %v384, 0.0
    %v399 = vadd.f32 %v397, %v398
    %v400 = vsel %vm357, %v386, 0.0
    %v401 = vadd.f32 %v399, %v400
    %v402 = vsel %vm357, %v388, 0.0
    %v403 = vadd.f32 %v401, %v402
    %v404 = vsel %vm357, %v390, 0.0
    %v405 = vadd.f32 %v403, %v404
    %v406 = vsel %vm357, %v392, 0.0
    %v407 = vadd.f32 %v405, %v406
    %v408 = vsel %vm357, %v394, 0.0
    %v409 = vadd.f32 %v407, %v408
    %v410 = vsel %vm357, %v396, 0.0
    %v411 = vadd.f32 %v409, %v410
    %v412 = vrcp.pop %v411
    %v413 = vmul.f32 %v411, %v412
    %v414 = vsub.f32 1.0, %v413
    %v415 = vmul.f32 %v412, %v414
    %v416 = vadd.f32 %v412, %v415
    %vm417 = vweird.f32 %v411
    %vm418 = vweird.f32 %v412
    %vm419 = vmor %vm417, %vm418
    %v420 = vsel %vm419, %v412, %v416
    %v421 = vand.u32 2147483647, %v411
    %vm422 = vcmp.eq.f32.partialorder %v421, 8.507059e+37
    %v423 = vand.u32 %v411, 2147483648
    %v424 = vor.u32 1.1754944e-38, %v423
    %v425 = vsel %vm422, %v424, %v420
    %v426 = vmul.f32 %v382, %v425
    %v427 = vmul.f32 %v384, %v425
    %v428 = vmul.f32 %v386, %v425
    %v429 = vmul.f32 %v388, %v425
    %v430 = vmul.f32 %v390, %v425
    %v431 = vmul.f32 %v392, %v425
    %v432 = vmul.f32 %v394, %v425
    %v433 = vmul.f32 %v396, %v425
    %v434 = vmul.f32 %v91, %v426
    %v435 = vmul.f32 %v92, %v427
    %v436 = vmul.f32 %v93, %v428
    %v437 = vmul.f32 %v94, %v429
    %v438 = vmul.f32 %v95, %v430
    %v439 = vmul.f32 %v96, %v431
    %v440 = vmul.f32 %v97, %v432
    %v441 = vmul.f32 %v98, %v433
    %v442 = vsel %vm101, %v434, 0.0
    %v443 = vsel %vm101, %v435, 0.0
    %v444 = vadd.f32 %v442, %v443
    %v445 = vsel %vm101, %v436, 0.0
    %v446 = vadd.f32 %v444, %v445
    %v447 = vsel %vm101, %v437, 0.0
    %v448 = vadd.f32 %v446, %v447
    %v449 = vsel %vm101, %v438, 0.0
    %v450 = vadd.f32 %v448, %v449
    %v451 = vsel %vm101, %v439, 0.0
    %v452 = vadd.f32 %v450, %v451
    %v453 = vsel %vm101, %v440, 0.0
    %v454 = vadd.f32 %v452, %v453
    %v455 = vsel %vm101, %v441, 0.0
    %v456 = vadd.f32 %v454, %v455
    %457 = vst.msk [vmem:[#allocation3] sm:$0x3] %vm101, %v456
    %458 = vrot.lane.b32.xlu0 %v285, 96
    %v459 = vpop.permute.xlu0 %458
    %461 = vst.msk [vmem:[#allocation3] sm:$0x3] %vm107, %v459
    %v462 = vld [vmem:[#allocation3] sm:$0x3]
    %v463 = vld [vmem:[%s7] sm:$0xff]
    %v464 = vld [vmem:[%s7 + $0x8] sm:$0xff]
    %v465 = vld [vmem:[%s7 + $0x10] sm:$0xff]
    %v466 = vld [vmem:[%s7 + $0x18] sm:$0xff]
    %v467 = vld [vmem:[%s7 + $0x20] sm:$0xff]
    %v468 = vld [vmem:[%s7 + $0x28] sm:$0xff]
    %v469 = vld [vmem:[%s7 + $0x30] sm:$0xff]
    %v470 = vld [vmem:[%s7 + $0x38] sm:$0xff]
    %v471 = vld [vmem:[%s8] sm:$0x1]
    %v473 = vperm.slane %v471, 0
    %v476 = vsel %vm122, %v462, 0
    %478 = vmatpush.msra.mxu0 0.0
    %479 = vmatpush.msra.mxu0 0.0
    %480 = vmatpush.msra.mxu0 0.0
    %481 = vmatpush.msra.mxu0 0.0
    %482 = vmatpush.msra.mxu0 0.0
    %483 = vmatpush.msra.mxu0 0.0
    %484 = vmatpush.msra.mxu0 0.0
    %485 = vmatpush.msra.mxu0 0.0
    %486 = vmatpush.msra.mxu0 %v470
    %487 = vmatpush.msra.mxu0 %v469
    %488 = vmatpush.msra.mxu0 %v468
    %489 = vmatpush.msra.mxu0 %v467
    %490 = vmatpush.msra.mxu0 %v466
    %491 = vmatpush.msra.mxu0 %v465
    %492 = vmatpush.msra.mxu0 %v464
    %493 = vmatpush.msra.mxu0 %v463
    %494 = vmatmul.f32.gmra.mxu0 %v476
    %v495 = vpop.f32.mrf.mxu0
    %v496 = vadd.f32 %v473, %v495
    %497 = vdwg.mxu0
    %v498 = vtanh.pop %v496
    %v499 = vld [vmem:[%s9] sm:$0xff]
    %v500 = vld [vmem:[%s9 + $0x8] sm:$0xff]
    %v501 = vld [vmem:[%s9 + $0x10] sm:$0xff]
    %v502 = vld [vmem:[%s9 + $0x18] sm:$0xff]
    %v503 = vld [vmem:[%s10] sm:$0x1]
    %v505 = vperm.slane %v503, 0
    %v508 = vsel %vm302, %v498, 0
    %510 = vmatpush.msra.mxu0 0.0
    %511 = vmatpush.msra.mxu0 0.0
    %512 = vmatpush.msra.mxu0 0.0
    %513 = vmatpush.msra.mxu0 0.0
    %514 = vmatpush.msra.mxu0 0.0
    %515 = vmatpush.msra.mxu0 0.0
    %516 = vmatpush.msra.mxu0 0.0
    %517 = vmatpush.msra.mxu0 0.0
    %518 = vmatpush.msra.mxu0 0.0
    %519 = vmatpush.msra.mxu0 0.0
    %520 = vmatpush.msra.mxu0 0.0
    %521 = vmatpush.msra.mxu0 0.0
    %522 = vmatpush.msra.mxu0 %v502
    %523 = vmatpush.msra.mxu0 %v501
    %524 = vmatpush.msra.mxu0 %v500
    %525 = vmatpush.msra.mxu0 %v499
    %526 = vmatmul.f32.gmra.mxu0 %v508
    %v527 = vpop.f32.mrf.mxu0
    %v528 = vadd.f32 %v505, %v527
    %529 = vdwg.mxu0
    %v530 = vsel %vm357, %v528, -inf
    %531 = vmax.xlane.f32.xlu0 %v530
    %v532 = vpop.xlane.xlu0 %531
    %v533 = vsub.f32 %v528, %v532
    %v534 = vmul.f32 %v533, 1.442695
    %v535 = vpow.pop %v534
    %v536 = vsel %vm357, %v535, 0.0
    %537 = vadd.xlane.f32.xlu0 %v536
    %v538 = vpop.xlane.xlu0 %537
    %v539 = vlog2.pop %v538
    %v540 = vmul.f32 %v539, 0.6931472
    %v541 = vadd.f32 %v532, %v540
    %v542 = vsub.f32 %v528, %v541
    %543 = vst [vmem:[#allocation10] sm:$0x3] %v542
    // Predicated region
    $region58: #{tpu_custom_call.1} parent=1 // pred_check
      _
    $region59: #{tpu_custom_call.1} parent=1 // pred_check_branch
      %545 = sbr.rel (0) target = $region61
    $region60: #{tpu_custom_call.1} parent=1 // pred_region
      %547 = vsyncadd [#allocation6], 0
      %s549 = sshll.u32 [#allocation10], 4
      %s550 = int_to_ptr.vmem [resolvable:$true] %s549
      %s551 = sshll.u32 %s11, 4
      %s552 = int_to_ptr.hbm [resolvable:$true] %s551
      %554 = dma.vmem_to_hbm [thread:$0]  %s550, 32, %s552, [#allocation6]
    $region61: #{tpu_custom_call.1} parent=1 // pred_fallthru
      _
    // Predicated region
    $region62: #{tpu_custom_call.1} parent=1 // pred_check
      _
    $region63: #{tpu_custom_call.1} parent=1 // pred_check_branch
      %556 = sbr.rel (0) target = $region65
    $region64: #{tpu_custom_call.1} parent=1 // pred_region
      %558 = vsyncadd [#allocation12], 0
      %s559 = sshll.u32 [#allocation11], 4
      %s560 = int_to_ptr.vmem [resolvable:$true] %s559
      %s561 = sshll.u32 %s12, 4
      %s562 = int_to_ptr.hbm [resolvable:$true] %s561
      %567 = dma.vmem_to_hbm [thread:$0]  %s560, 64, %s562, [#allocation12], 32, 32, 2
    $region65: #{tpu_custom_call.1} parent=1 // pred_fallthru
      _
    // Predicated region
    $region66: #{tpu_custom_call.1} parent=1 // pred_check
      _
    $region67: #{tpu_custom_call.1} parent=1 // pred_check_branch
      %569 = sbr.rel (0) target = $region69
    $region68: #{tpu_custom_call.1} parent=1 // pred_region
      %571 = vsyncadd [#allocation12], 0
      %s572 = sshll.u32 [#allocation13], 4
      %s573 = int_to_ptr.vmem [resolvable:$true] %s572
      %s574 = sshll.u32 %s13, 4
      %s575 = int_to_ptr.hbm [resolvable:$true] %s574
      %580 = dma.vmem_to_hbm [thread:$0]  %s573, 64, %s575, [#allocation12], 32, 32, 2
    $region69: #{tpu_custom_call.1} parent=1 // pred_fallthru
      _
    // Predicated region
    $region70: #{tpu_custom_call.1} parent=1 // pred_check
      _
    $region71: #{tpu_custom_call.1} parent=1 // pred_check_branch
      %582 = sbr.rel (0) target = $region73
    $region72: #{tpu_custom_call.1} parent=1 // pred_region
      %584 = dma.done [#allocation6], 32
    $region73: #{tpu_custom_call.1} parent=1 // pred_fallthru
      _
    // Predicated region
    $region74: #{tpu_custom_call.1} parent=1 // pred_check
      _
    $region75: #{tpu_custom_call.1} parent=1 // pred_check_branch
      %586 = sbr.rel (0) target = $region77
    $region76: #{tpu_custom_call.1} parent=1 // pred_region
      %588 = dma.done [#allocation12], 64
    $region77: #{tpu_custom_call.1} parent=1 // pred_fallthru
      _
    // Predicated region
    $region78: #{tpu_custom_call.1} parent=1 // pred_check
      _
    $region79: #{tpu_custom_call.1} parent=1 // pred_check_branch
      %590 = sbr.rel (0) target = $region81
    $region80: #{tpu_custom_call.1} parent=1 // pred_region
      %592 = dma.done [#allocation12], 64
    $region81: #{tpu_custom_call.1} parent=1 // pred_fallthru
      _
    %593 = vsyncpa [#allocation5], 1
    %594 = vsyncpa [#allocation8], 1
    %595 = vsyncpa [#allocation6], 1
    %596 = vsyncpa [#allocation12], 1

</llo_original>
